<compile_context>
chip_gen: v5e
topology: v5e:2x2
jax: 0.10.0
libtpu: 0.0.40
codegen_flags: <defaults>
</compile_context>

<pallas_src>
import functools

import jax
import jax.numpy as jnp
from jax.experimental import pallas as pl
from jax.experimental.pallas import tpu as pltpu

ALPHA = 0.05
NUM_LAYERS = 2


def _pi_sgc_kernel(a_ref, xk_ref, xi_ref, w_ref, b_ref, o_ref,
                   h_buf, acc_buf, p_acc, *, num_layers, alpha, tile, n_pad):
    """Tiled propagation + residual sum + fused linear/log_softmax epilogue.

    Grid: (layer L [arbitrary], row tile i [arbitrary], k tile k [arbitrary]).

    a_ref  : [tile, tile]  bf16  A_hat block (i, k)
    xk_ref : [tile, Fpad]  bf16  x rows of k-tile (h0 seed)
    xi_ref : [tile, Fpad]  f32   x rows of i-tile (alpha * x residual)
    w_ref  : [Fpad, Cpad]  f32   linear weight (transposed, zero padded)
    b_ref  : [1,  Cpad]    f32   bias (padded classes = -1e30)
    o_ref  : [tile, Cpad]  f32   log-probabilities for row tile i
    h_buf  : [2*Npad, Fpad] bf16 scratch: double-buffered propagated features
    acc_buf: [Npad,  Fpad] f32  scratch: residual accumulator (alpha*x + sum h_l)
    p_acc  : [tile,  Fpad] f32  scratch: partial A @ h for the current row tile
    """
    layer = pl.program_id(0)
    i = pl.program_id(1)
    k = pl.program_id(2)
    nk = pl.num_programs(2)

    # Layer L reads h from slot (L+1) % 2 and writes to slot L % 2.
    # x seeds slot 1 (the read slot of layer 0) during layer 0's first row pass.
    read_off = ((layer + 1) % 2) * n_pad
    write_off = (layer % 2) * n_pad

    @pl.when(jnp.logical_and(layer == 0, i == 0))
    def _seed_h0():
        h_buf[pl.ds(pl.multiple_of(n_pad + k * tile, tile), tile), :] = xk_ref[...]

    row = pl.ds(pl.multiple_of(i * tile, tile), tile)

    # Residual init: acc = alpha * x (done once per row tile, at layer 0, k == 0).
    @pl.when(jnp.logical_and(layer == 0, k == 0))
    def _init_acc():
        acc_buf[row, :] = alpha * xi_ref[...]

    @pl.when(k == 0)
    def _zero_partial():
        p_acc[...] = jnp.zeros_like(p_acc)

    # Accumulate A[i, k] @ h_prev[k] on the MXU (bf16 operands, f32 accumulate).
    hk = h_buf[pl.ds(pl.multiple_of(read_off + k * tile, tile), tile), :]
    p_acc[...] += jnp.dot(a_ref[...], hk, preferred_element_type=jnp.float32)

    @pl.when(k == nk - 1)
    def _finalize_row_tile():
        scale = (1.0 - alpha) / float(num_layers)
        new_h = scale * p_acc[...]                               # [tile, Fpad] f32

        acc_new = acc_buf[row, :] + new_h                        # residual sum (f32)
        acc_buf[row, :] = acc_new
        h_buf[pl.ds(pl.multiple_of(write_off + i * tile, tile), tile), :] = (
            new_h.astype(jnp.bfloat16))

        # Fused linear + log_softmax epilogue (cheap; the last layer's write wins).
        logits = jnp.dot(acc_new, w_ref[...], preferred_element_type=jnp.float32)
        logits = logits + b_ref[...]
        m = jnp.max(logits, axis=1, keepdims=True)
        z = logits - m
        lse = jnp.log(jnp.sum(jnp.exp(z), axis=1, keepdims=True))
        o_ref[...] = (z - lse).astype(o_ref.dtype)


def pi_sgc_forward(a_hat, x, w_lin, b_lin, *, num_layers=NUM_LAYERS, alpha=ALPHA,
                   tile=128):
    """a_hat: [N,N] f32, x: [N,F] f32, w_lin: [C,F] f32, b_lin: [C] f32 -> [N,C] f32."""
    n, f = x.shape
    c = w_lin.shape[0]

    n_pad = pl.cdiv(n, tile) * tile
    f_pad = max(128, pl.cdiv(f, 128) * 128)
    c_pad = max(128, pl.cdiv(c, 128) * 128)

    # ---- glue (plain JAX): pad to lane-dense shapes, cast A/h operands to bf16 ----
    a_bf16 = jnp.zeros((n_pad, n_pad), jnp.bfloat16).at[:n, :n].set(
        a_hat.astype(jnp.bfloat16))
    x_f32 = jnp.zeros((n_pad, f_pad), jnp.float32).at[:n, :f].set(x)
    x_bf16 = x_f32.astype(jnp.bfloat16)
    w_pad = jnp.zeros((f_pad, c_pad), jnp.float32).at[:f, :c].set(
        jnp.transpose(w_lin).astype(jnp.float32))
    # Padded classes get a huge negative bias so exp() underflows to exactly 0.
    b_pad = jnp.full((1, c_pad), -1e30, jnp.float32).at[0, :c].set(b_lin)

    n_tiles = n_pad // tile
    grid = (num_layers, n_tiles, n_tiles)

    kernel = functools.partial(_pi_sgc_kernel, num_layers=num_layers, alpha=alpha,
                               tile=tile, n_pad=n_pad)

    cost = pl.CostEstimate(
        flops=int(2 * num_layers * n_pad * n_pad * f_pad + 2 * n_pad * f_pad * c_pad),
        transcendentals=int(num_layers * n_pad * c_pad),
        bytes_accessed=int(num_layers * n_pad * n_pad * 2          # bf16 A per layer
                           + n_pad * (f_pad * 6 + c_pad * 4)),
    )

    out = pl.pallas_call(
        kernel,
        out_shape=jax.ShapeDtypeStruct((n_pad, c_pad), jnp.float32),
        grid_spec=pltpu.PrefetchScalarGridSpec(
            num_scalar_prefetch=0,
            grid=grid,
            in_specs=[
                # A_hat tile (i, k): the only big streamed operand.
                pl.BlockSpec((tile, tile), lambda L, i, k: (i, k)),
                # x rows of the k tile (bf16) -> h0 seed for layer 0.
                pl.BlockSpec((tile, f_pad), lambda L, i, k: (k, 0)),
                # x rows of the i tile (f32) -> alpha * x residual init.
                pl.BlockSpec((tile, f_pad), lambda L, i, k: (i, 0)),
                # Linear weight / bias: tiny, VMEM-resident (constant block index).
                pl.BlockSpec((f_pad, c_pad), lambda L, i, k: (0, 0)),
                pl.BlockSpec((1, c_pad), lambda L, i, k: (0, 0)),
            ],
            out_specs=pl.BlockSpec((tile, c_pad), lambda L, i, k: (i, 0)),
            scratch_shapes=[
                pltpu.VMEM((2 * n_pad, f_pad), jnp.bfloat16),   # h double buffer
                pltpu.VMEM((n_pad, f_pad), jnp.float32),        # residual accumulator
                pltpu.VMEM((tile, f_pad), jnp.float32),         # partial A @ h
            ],
        ),
        compiler_params=pltpu.CompilerParams(
            # h/acc scratch is shared across row tiles and layers, so every axis
            # must stay sequential ("arbitrary") — megacore row sharding would
            # split the resident h between cores and break layer L+1.
            dimension_semantics=("arbitrary", "arbitrary", "arbitrary"),
            vmem_limit_bytes=32 * 1024 * 1024,
        ),
        cost_estimate=cost,
    )(a_bf16, x_bf16, x_f32, w_pad, b_pad)

    return out[:n, :c]


def build_normalized_adjacency(edge_index, edge_attr, num_nodes):
    """Dense GCN normalization: D^-1/2 (A + I) D^-1/2, with edge weights."""
    src, dst = edge_index[0], edge_index[1]
    a = jnp.zeros((num_nodes, num_nodes), jnp.float32)
    a = a.at[dst, src].add(edge_attr)
    a = a + jnp.eye(num_nodes, dtype=jnp.float32)      # self loops
    deg = jnp.sum(a, axis=1)
    d_inv_sqrt = jnp.where(deg > 0, 1.0 / jnp.sqrt(deg), 0.0)
    return a * d_inv_sqrt[:, None] * d_inv_sqrt[None, :]


def pure_jax_reference(a_hat, x, w_lin, b_lin, *, num_layers=NUM_LAYERS, alpha=ALPHA):
    scale = (1.0 - alpha) / num_layers
    h = x
    acc = alpha * x
    for _ in range(num_layers):
        h = scale * (a_hat @ h)
        acc = acc + h
    logits = acc @ w_lin.T + b_lin
    return jax.nn.log_softmax(logits, axis=1)


if __name__ == "__main__":
    # Small synthetic "dataset": N nodes, F features, C classes.
    # N=256 with tile=128 exercises a real (layer=2, row=2, k=2) grid.
    N, F, C, E = 256, 32, 8, 1024

    key = jax.random.PRNGKey(0)
    k_x, k_src, k_dst, k_w, k_lin, k_b = jax.random.split(key, 6)

    x = jax.random.normal(k_x, (N, F), jnp.float32)
    edge_index = jnp.stack(
        [jax.random.randint(k_src, (E,), 0, N),
         jax.random.randint(k_dst, (E,), 0, N)], axis=0)       # [2, E]
    edge_attr = jax.random.uniform(k_w, (E,), jnp.float32, 0.1, 1.0)

    # Deterministic nn.Linear(F, C)-shaped params (synthetic init, no checkpoint).
    bound = 1.0 / (F ** 0.5)
    w_lin = jax.random.uniform(k_lin, (C, F), jnp.float32, -bound, bound)
    b_lin = jax.random.uniform(k_b, (C,), jnp.float32, -bound, bound)

    a_hat = build_normalized_adjacency(edge_index, edge_attr, N)

    out = pi_sgc_forward(a_hat, x, w_lin, b_lin)
    out = jax.block_until_ready(out)

    ref = pure_jax_reference(a_hat, x, w_lin, b_lin)
    assert out.shape == (N, C)
    # Tolerance loosened vs the all-f32 version: A_hat/h propagation runs in bf16
    # on the MXU (intentional perf tradeoff); accumulation/epilogue stay f32.
    max_err = float(jnp.max(jnp.abs(out - ref)))
    assert max_err < 5e-2, f"mismatch vs reference: max abs err {max_err}"

    print("KERNEL_OK")
</pallas_src>

<mosaic_0001>
module attributes {stable_mosaic.version = 11 : i64} {
  func.func @_pi_sgc_kernel(%arg0: i32, %arg1: i32, %arg2: i32, %arg3: memref<128x128xbf16, #tpu.memory_space<vmem>>, %arg4: memref<128x128xbf16, #tpu.memory_space<vmem>>, %arg5: memref<128x128xf32, #tpu.memory_space<vmem>>, %arg6: memref<128x128xf32, #tpu.memory_space<vmem>>, %arg7: memref<1x128xf32, #tpu.memory_space<vmem>>, %arg8: memref<128x128xf32, #tpu.memory_space<vmem>>, %arg9: memref<512x128xbf16, #tpu.memory_space<vmem>>, %arg10: memref<256x128xf32, #tpu.memory_space<vmem>>, %arg11: memref<128x128xf32, #tpu.memory_space<vmem>>) attributes {dimension_semantics = [#tpu.dimension_semantics<arbitrary>, #tpu.dimension_semantics<arbitrary>, #tpu.dimension_semantics<arbitrary>], iteration_bounds = array<i64: 2, 2, 2>, scalar_prefetch = 0 : i64, scratch_operands = 3 : i64, tpu.core_type = #tpu.core_type<tc>, window_params = [{transform_indices = @transform_0, window_bounds = array<i64: 128, 128>}, {transform_indices = @transform_1, window_bounds = array<i64: 128, 128>}, {transform_indices = @transform_2, window_bounds = array<i64: 128, 128>}, {pipeline_mode = #tpu.pipeline_mode<synchronous>, transform_indices = @transform_3, window_bounds = array<i64: 128, 128>}, {pipeline_mode = #tpu.pipeline_mode<synchronous>, transform_indices = @transform_4, window_bounds = array<i64: 1, 128>}, {transform_indices = @transform_5, window_bounds = array<i64: 128, 128>}]} {
    %c1_i32 = arith.constant 1 : i32
    %0 = arith.addi %arg0, %c1_i32 : i32
    %c2_i32 = arith.constant 2 : i32
    %c0_i32 = arith.constant 0 : i32
    %1 = arith.cmpi eq, %c2_i32, %c0_i32 : i32
    %c1_i32_0 = arith.constant 1 : i32
    %2 = arith.select %1, %c1_i32_0, %c2_i32 : i32
    %3 = arith.remsi %0, %2 : i32
    %c0_i32_1 = arith.constant 0 : i32
    %4 = arith.cmpi ne, %3, %c0_i32_1 : i32
    %c0_i32_2 = arith.constant 0 : i32
    %5 = arith.cmpi slt, %3, %c0_i32_2 : i32
    %c0_i32_3 = arith.constant 0 : i32
    %6 = arith.cmpi slt, %2, %c0_i32_3 : i32
    %7 = arith.xori %5, %6 : i1
    %8 = arith.andi %7, %4 : i1
    %9 = arith.addi %3, %2 : i32
    %10 = arith.select %8, %9, %3 : i32
    %c256_i32 = arith.constant 256 : i32
    %11 = arith.muli %10, %c256_i32 : i32
    %c2_i32_4 = arith.constant 2 : i32
    %c0_i32_5 = arith.constant 0 : i32
    %12 = arith.cmpi eq, %c2_i32_4, %c0_i32_5 : i32
    %c1_i32_6 = arith.constant 1 : i32
    %13 = arith.select %12, %c1_i32_6, %c2_i32_4 : i32
    %14 = arith.remsi %arg0, %13 : i32
    %c0_i32_7 = arith.constant 0 : i32
    %15 = arith.cmpi ne, %14, %c0_i32_7 : i32
    %c0_i32_8 = arith.constant 0 : i32
    %16 = arith.cmpi slt, %14, %c0_i32_8 : i32
    %c0_i32_9 = arith.constant 0 : i32
    %17 = arith.cmpi slt, %13, %c0_i32_9 : i32
    %18 = arith.xori %16, %17 : i1
    %19 = arith.andi %18, %15 : i1
    %20 = arith.addi %14, %13 : i32
    %21 = arith.select %19, %20, %14 : i32
    %c256_i32_10 = arith.constant 256 : i32
    %22 = arith.muli %21, %c256_i32_10 : i32
    %c0_i32_11 = arith.constant 0 : i32
    %23 = arith.cmpi eq, %arg0, %c0_i32_11 : i32
    %c0_i32_12 = arith.constant 0 : i32
    %24 = arith.cmpi eq, %arg1, %c0_i32_12 : i32
    %25 = arith.andi %23, %24 : i1
    %26 = arith.extui %25 : i1 to i32
    %c0_i32_13 = arith.constant 0 : i32
    %27 = arith.cmpi ne, %26, %c0_i32_13 : i32
    scf.if %27 {
      %c0_28 = arith.constant 0 : index
      %c0_29 = arith.constant 0 : index
      %51 = vector.load %arg4[%c0_28, %c0_29] : memref<128x128xbf16, #tpu.memory_space<vmem>>, vector<128x128xbf16>
      %c128_i32_30 = arith.constant 128 : i32
      %52 = arith.muli %arg2, %c128_i32_30 : i32
      %c256_i32_31 = arith.constant 256 : i32
      %53 = arith.addi %c256_i32_31, %52 : i32
      %54 = tpu.assume_multiple %53, 128 : i32
      %55 = arith.index_cast %54 : i32 to index
      %c0_32 = arith.constant 0 : index
      %56 = vector.load %arg9[%55, %c0_32] : memref<512x128xbf16, #tpu.memory_space<vmem>>, vector<128x128xbf16>
      tpu.vector_store %arg9[%55, %c0_32], %51 {strides = array<i32>} : memref<512x128xbf16, #tpu.memory_space<vmem>>, vector<128x128xbf16>,
    } else {
    }
    %c128_i32 = arith.constant 128 : i32
    %28 = arith.muli %arg1, %c128_i32 : i32
    %29 = tpu.assume_multiple %28, 128 : i32
    %c0_i32_14 = arith.constant 0 : i32
    %30 = arith.cmpi eq, %arg0, %c0_i32_14 : i32
    %c0_i32_15 = arith.constant 0 : i32
    %31 = arith.cmpi eq, %arg2, %c0_i32_15 : i32
    %32 = arith.andi %30, %31 : i1
    %33 = arith.extui %32 : i1 to i32
    %c0_i32_16 = arith.constant 0 : i32
    %34 = arith.cmpi ne, %33, %c0_i32_16 : i32
    scf.if %34 {
      %c0_28 = arith.constant 0 : index
      %c0_29 = arith.constant 0 : index
      %51 = vector.load %arg5[%c0_28, %c0_29] : memref<128x128xf32, #tpu.memory_space<vmem>>, vector<128x128xf32>
      %cst_30 = arith.constant 5.000000e-02 : f32
      %52 = vector.broadcast %cst_30 : f32 to vector<128x128xf32>
      %53 = arith.mulf %52, %51 : vector<128x128xf32>
      %54 = arith.index_cast %29 : i32 to index
      %c0_31 = arith.constant 0 : index
      %55 = vector.load %arg10[%54, %c0_31] : memref<256x128xf32, #tpu.memory_space<vmem>>, vector<128x128xf32>
      tpu.vector_store %arg10[%54, %c0_31], %53 {strides = array<i32>} : memref<256x128xf32, #tpu.memory_space<vmem>>, vector<128x128xf32>,
    } else {
    }
    %c0_i32_17 = arith.constant 0 : i32
    %35 = arith.cmpi eq, %arg2, %c0_i32_17 : i32
    %36 = arith.extui %35 : i1 to i32
    %c0_i32_18 = arith.constant 0 : i32
    %37 = arith.cmpi ne, %36, %c0_i32_18 : i32
    scf.if %37 {
      %cst_28 = arith.constant 0.000000e+00 : f32
      %51 = vector.broadcast %cst_28 : f32 to vector<128x128xf32>
      %c0_29 = arith.constant 0 : index
      %c0_30 = arith.constant 0 : index
      %52 = vector.load %arg11[%c0_29, %c0_30] : memref<128x128xf32, #tpu.memory_space<vmem>>, vector<128x128xf32>
      tpu.vector_store %arg11[%c0_29, %c0_30], %51 {strides = array<i32>} : memref<128x128xf32, #tpu.memory_space<vmem>>, vector<128x128xf32>,
    } else {
    }
    %c128_i32_19 = arith.constant 128 : i32
    %38 = arith.muli %arg2, %c128_i32_19 : i32
    %39 = arith.addi %11, %38 : i32
    %40 = tpu.assume_multiple %39, 128 : i32
    %41 = arith.index_cast %40 : i32 to index
    %c0 = arith.constant 0 : index
    %42 = vector.load %arg9[%41, %c0] : memref<512x128xbf16, #tpu.memory_space<vmem>>, vector<128x128xbf16>
    %c0_20 = arith.constant 0 : index
    %c0_21 = arith.constant 0 : index
    %43 = vector.load %arg11[%c0_20, %c0_21] : memref<128x128xf32, #tpu.memory_space<vmem>>, vector<128x128xf32>
    %c0_22 = arith.constant 0 : index
    %c0_23 = arith.constant 0 : index
    %44 = vector.load %arg3[%c0_22, %c0_23] : memref<128x128xbf16, #tpu.memory_space<vmem>>, vector<128x128xbf16>
    %cst = arith.constant dense<0.000000e+00> : vector<128x128xf32>
    %45 = tpu.matmul %44, %42, %cst {dimension_numbers = #tpu.dot_dimension_numbers<[1], [0], [0], [1], [0, 0, 1, 1], [], []>} : vector<128x128xbf16>, vector<128x128xbf16>, vector<128x128xf32> -> vector<128x128xf32>
    %46 = arith.addf %43, %45 : vector<128x128xf32>
    %c0_24 = arith.constant 0 : index
    %c0_25 = arith.constant 0 : index
    %47 = vector.load %arg11[%c0_24, %c0_25] : memref<128x128xf32, #tpu.memory_space<vmem>>, vector<128x128xf32>
    tpu.vector_store %arg11[%c0_24, %c0_25], %46 {strides = array<i32>} : memref<128x128xf32, #tpu.memory_space<vmem>>, vector<128x128xf32>,
    %c1_i32_26 = arith.constant 1 : i32
    %48 = arith.cmpi eq, %arg2, %c1_i32_26 : i32
    %49 = arith.extui %48 : i1 to i32
    %c0_i32_27 = arith.constant 0 : i32
    %50 = arith.cmpi ne, %49, %c0_i32_27 : i32
    scf.if %50 {
      %c0_28 = arith.constant 0 : index
      %c0_29 = arith.constant 0 : index
      %51 = vector.load %arg11[%c0_28, %c0_29] : memref<128x128xf32, #tpu.memory_space<vmem>>, vector<128x128xf32>
      %cst_30 = arith.constant 4.750000e-01 : f32
      %52 = vector.broadcast %cst_30 : f32 to vector<128x128xf32>
      %53 = arith.mulf %52, %51 : vector<128x128xf32>
      %54 = arith.index_cast %29 : i32 to index
      %c0_31 = arith.constant 0 : index
      %55 = vector.load %arg10[%54, %c0_31] : memref<256x128xf32, #tpu.memory_space<vmem>>, vector<128x128xf32>
      %56 = arith.addf %55, %53 : vector<128x128xf32>
      %57 = arith.index_cast %29 : i32 to index
      %c0_32 = arith.constant 0 : index
      %58 = vector.load %arg10[%57, %c0_32] : memref<256x128xf32, #tpu.memory_space<vmem>>, vector<128x128xf32>
      tpu.vector_store %arg10[%57, %c0_32], %56 {strides = array<i32>} : memref<256x128xf32, #tpu.memory_space<vmem>>, vector<128x128xf32>,
      %59 = arith.truncf %53 : vector<128x128xf32> to vector<128x128xbf16>
      %c128_i32_33 = arith.constant 128 : i32
      %60 = arith.muli %arg1, %c128_i32_33 : i32
      %61 = arith.addi %22, %60 : i32
      %62 = tpu.assume_multiple %61, 128 : i32
      %63 = arith.index_cast %62 : i32 to index
      %c0_34 = arith.constant 0 : index
      %64 = vector.load %arg9[%63, %c0_34] : memref<512x128xbf16, #tpu.memory_space<vmem>>, vector<128x128xbf16>
      tpu.vector_store %arg9[%63, %c0_34], %59 {strides = array<i32>} : memref<512x128xbf16, #tpu.memory_space<vmem>>, vector<128x128xbf16>,
      %c0_35 = arith.constant 0 : index
      %c0_36 = arith.constant 0 : index
      %65 = vector.load %arg6[%c0_35, %c0_36] : memref<128x128xf32, #tpu.memory_space<vmem>>, vector<128x128xf32>
      %cst_37 = arith.constant dense<0.000000e+00> : vector<128x128xf32>
      %66 = tpu.matmul %56, %65, %cst_37 {dimension_numbers = #tpu.dot_dimension_numbers<[1], [0], [0], [1], [0, 0, 1, 1], [], []>} : vector<128x128xf32>, vector<128x128xf32>, vector<128x128xf32> -> vector<128x128xf32>
      %c0_38 = arith.constant 0 : index
      %c0_39 = arith.constant 0 : index
      %67 = vector.load %arg7[%c0_38, %c0_39] : memref<1x128xf32, #tpu.memory_space<vmem>>, vector<1x128xf32>
      %68 = vector.broadcast %67 : vector<1x128xf32> to vector<128x128xf32>
      %69 = arith.addf %66, %68 : vector<128x128xf32>
      %cst_40 = arith.constant dense<0xFF800000> : vector<128xf32>
      %70 = vector.multi_reduction <maximumf>, %69, %cst_40 [1] : vector<128x128xf32> to vector<128xf32>
      %71 = vector.shape_cast %70 : vector<128xf32> to vector<128x1xf32>
      %72 = vector.broadcast %71 : vector<128x1xf32> to vector<128x128xf32>
      %73 = arith.subf %69, %72 : vector<128x128xf32>
      %74 = math.exp %73 : vector<128x128xf32>
      %cst_41 = arith.constant dense<0.000000e+00> : vector<128xf32>
      %75 = vector.multi_reduction <add>, %74, %cst_41 [1] : vector<128x128xf32> to vector<128xf32>
      %76 = vector.shape_cast %75 : vector<128xf32> to vector<128x1xf32>
      %77 = math.log %76 : vector<128x1xf32>
      %78 = vector.broadcast %77 : vector<128x1xf32> to vector<128x128xf32>
      %79 = arith.subf %73, %78 : vector<128x128xf32>
      %c0_42 = arith.constant 0 : index
      %c0_43 = arith.constant 0 : index
      %80 = vector.load %arg8[%c0_42, %c0_43] : memref<128x128xf32, #tpu.memory_space<vmem>>, vector<128x128xf32>
      tpu.vector_store %arg8[%c0_42, %c0_43], %79 {strides = array<i32>} : memref<128x128xf32, #tpu.memory_space<vmem>>, vector<128x128xf32>,
    } else {
    }
    return
  }
  func.func @transform_0(%arg0: i32, %arg1: i32, %arg2: i32) -> (i32, i32) {
    %c0_i32 = arith.constant 0 : i32
    return %arg1, %arg2 : i32, i32
  }
  func.func @transform_1(%arg0: i32, %arg1: i32, %arg2: i32) -> (i32, i32) {
    %c0_i32 = arith.constant 0 : i32
    %c0_i32_0 = arith.constant 0 : i32
    return %arg2, %c0_i32 : i32, i32
  }
  func.func @transform_2(%arg0: i32, %arg1: i32, %arg2: i32) -> (i32, i32) {
    %c0_i32 = arith.constant 0 : i32
    %c0_i32_0 = arith.constant 0 : i32
    return %arg1, %c0_i32 : i32, i32
  }
  func.func @transform_3(%arg0: i32, %arg1: i32, %arg2: i32) -> (i32, i32) {
    %c0_i32 = arith.constant 0 : i32
    %c0_i32_0 = arith.constant 0 : i32
    %c0_i32_1 = arith.constant 0 : i32
    return %c0_i32, %c0_i32_0 : i32, i32
  }
  func.func @transform_4(%arg0: i32, %arg1: i32, %arg2: i32) -> (i32, i32) {
    %c0_i32 = arith.constant 0 : i32
    %c0_i32_0 = arith.constant 0 : i32
    %c0_i32_1 = arith.constant 0 : i32
    return %c0_i32, %c0_i32_0 : i32, i32
  }
  func.func @transform_5(%arg0: i32, %arg1: i32, %arg2: i32) -> (i32, i32) {
    %c0_i32 = arith.constant 0 : i32
    %c0_i32_0 = arith.constant 0 : i32
    return %arg1, %c0_i32 : i32, i32
  }
}

</mosaic_0001>

<llo_original>
// kernel: tpu_custom_call.1
$region0: #{tpu_custom_call.1}
  #allocation0 [shape = 'u32[]', space=smem, size = 0x4, offset = 0x4, fixed_abs, tag = 'smem constant byte address 0x4 - core index']
  #allocation1 [shape = 'u32[72,128]{1,0:T(1,128)}', space=vmem, size = 0x9000, scoped, tag = 'internal scratch']
  #allocation2 [shape = 'bf16[512,128]{1,0:T(8,128)(2,1)}', space=vmem, size = 0x20000, scoped, tag = 'scratch operand']
  #allocation3 [shape = 'f32[256,128]{1,0:T(8,128)}', space=vmem, size = 0x20000, scoped, tag = 'scratch operand']
  #allocation4 [shape = 'f32[128,128]{1,0:T(8,128)}', space=vmem, size = 0x10000, scoped, tag = 'scratch operand']
  %s0 = inlined_call_operand.hbm [shape: bf16[256,256], index: 0, kind: input, shape index: {}]
  %s1 = inlined_call_operand.hbm [shape: bf16[256,128], index: 1, kind: input, shape index: {}]
  %s2 = inlined_call_operand.hbm [shape: f32[256,128], index: 2, kind: input, shape index: {}]
  %s3 = inlined_call_operand.hbm [shape: f32[128,128], index: 3, kind: input, shape index: {}]
  %s4 = inlined_call_operand.vmem [shape: f32[1,128], index: 4, kind: input, shape index: {}]
  %s5 = inlined_call_operand.hbm [shape: f32[256,128], index: 5, kind: output, shape index: {}]
  %s6 = sld [smem:[#allocation0]]
  $region85: #{tpu_custom_call.1} parent=0
    _
  %s8 = ssub.s32 1, %s6
  %s9 = scalar_select 0, %s8, %s6
  $region1: #{tpu_custom_call.1} parent=0
    #allocation5 [shape = 'u8[65536]{0}', space=vmem, size = 0x10000, scoped, tag = 'input window, operand 0']
    #allocation6 [shape = 's32[2]{0}', space=sflag, size = 0x8, scoped, tag = 'scoped memory for tpu_custom_call.1']
    #allocation7 [shape = 's32[2]{0}', space=sflag, size = 0x8, scoped, tag = 'scoped memory for tpu_custom_call.1']
    #allocation8 [shape = 'u8[65536]{0}', space=vmem, size = 0x10000, scoped, tag = 'input window, operand 1']
    #allocation9 [shape = 's32[2]{0}', space=sflag, size = 0x8, scoped, tag = 'scoped memory for tpu_custom_call.1']
    #allocation10 [shape = 'u8[131072]{0}', space=vmem, size = 0x20000, scoped, tag = 'input window, operand 2']
    #allocation11 [shape = 'u8[65536]{0}', space=vmem, size = 0x10000, scoped, tag = 'input window, operand 3, single buffered']
    #allocation12 [shape = 's32[1]{0}', space=sflag, size = 0x4, scoped, tag = 'scoped memory for tpu_custom_call.1']
    #allocation13 [shape = 'u8[131072]{0}', space=vmem, size = 0x20000, scoped, tag = 'output window, operand 0']
    %10 = vsyncpa [#allocation6], 0
    %s11 = scalar_lea.sflag [#allocation6], 1
    %12 = vsyncpa %s11, 0
    %13 = vsyncpa [#allocation9], 0
    %s14 = scalar_lea.sflag [#allocation9], 1
    %15 = vsyncpa %s14, 0
    %16 = vsyncpa [#allocation12], 0
    %17 = vsyncpa [#allocation7], 0
    %s18 = scalar_lea.sflag [#allocation7], 1
    %19 = vsyncpa %s18, 0
    loop: start=0, step=1, limit=10
    $region2: #{tpu_custom_call.1} parent=1 // loop_pre_header
      _
    $region3: #{tpu_custom_call.1} parent=1 // loop_header
      %s21 = sphi 0, %s25
      %p22 = scmp.ge.s32.totalorder %s21, 10
      %s28 = sphi 0, %s47
      %s29 = sphi 0, %s43
      %s30 = sphi 0, %s39
      %s31 = sphi 0, %s28
      %s32 = sphi 0, %s29
      %s33 = sphi 0, %s30
      %s34 = sphi 0, %s31
      %s35 = sphi 0, %s32
      %s36 = sphi 0, %s33
      %s52 = sphi 0, %s54
      %s55 = sphi 0, %s52
      %s56 = sphi 0, %s55
      %s72 = sphi 0, %s56
      %s78 = sphi 0, %s80
      %s81 = sphi 0, %s78
      %s82 = sphi 0, %s81
      %s98 = sphi 0, %s82
      %s104 = sphi 0, %s106
      %s107 = sphi 0, %s104
      %s108 = sphi 0, %s107
      %s124 = sphi 0, %s108
      %s128 = sphi 0, %s128
      %s130 = sphi 0, %s128
      %s131 = sphi 0, %s130
      %s145 = sphi 0, %s131
      %s149 = sphi 0, %s149
      %s151 = sphi 0, %s149
      %s152 = sphi 0, %s151
      %s166 = sphi 0, %s152
      %s172 = sphi 0, %s174
      %s175 = sphi 0, %s172
      %s176 = sphi 0, %s175
      %s192 = sphi 0, %s176
    $region4: #{tpu_custom_call.1} parent=1 // loop_header_branch
      %24 = sbr.rel (%p22) target = $region8
    $region5: #{tpu_custom_call.1} parent=1 // loop_body
      %s26 = ssub.s32 %s21, 1
      %s27 = ssub.s32 %s21, 2
      %s37 = sadd.s32 1, %s30
      %p38 = scmp.ge.s32.totalorder %s37, 2
      %s39 = scalar_select %p38, 0, %s37
      %s40 = sadd.s32 1, %s29
      %s41 = scalar_select %p38, %s40, %s29
      %p42 = scmp.ge.s32.totalorder %s41, 2
      %s43 = scalar_select %p42, 0, %s41
      %s44 = sadd.s32 1, %s28
      %s45 = scalar_select %p42, %s44, %s28
      %p46 = scmp.ge.s32.totalorder %s45, 2
      %s47 = scalar_select %p46, 0, %s45
      %s48 = ssub.s32 %s29, %s43
      %s49 = ssub.s32 %s30, %s39
      %s50 = sor.u32 %s48, %s49
      %p51 = scmp.eq.s32.totalorder %s50, 0
      %s53 = sadd.s32 %s52, 1
      %s54 = scalar_select %p51, %s52, %s53
      %p57 = pneg %p51
      %p58 = scmp.eq.s32.totalorder %s21, 7
      %p59 = por %p57, %p58
      %p60 = scmp.ne.s32.totalorder %s52, %s55
      %p61 = scmp.eq.s32.totalorder %s21, 0
      %p62 = por %p60, %p61
      %p63 = scmp.ne.s32.totalorder %s52, %s55
      %p64 = scmp.eq.s32.totalorder %s26, 7
      %p65 = por %p63, %p64
      %p66 = scmp.ne.s32.totalorder %s55, %s56
      %p67 = scmp.eq.s32.totalorder %s26, 0
      %p68 = por %p66, %p67
      %p69 = scmp.ne.s32.totalorder %s55, %s56
      %p70 = scmp.eq.s32.totalorder %s27, 7
      %p71 = por %p69, %p70
      %p73 = scmp.ne.s32.totalorder %s56, %s72
      %p74 = scmp.eq.s32.totalorder %s27, 0
      %p75 = por %p73, %p74
      %s76 = ssub.s32 %s30, %s39
      %p77 = scmp.eq.s32.totalorder %s76, 0
      %s79 = sadd.s32 %s78, 1
      %s80 = scalar_select %p77, %s78, %s79
      %p83 = pneg %p77
      %p84 = scmp.eq.s32.totalorder %s21, 7
      %p85 = por %p83, %p84
      %p86 = scmp.ne.s32.totalorder %s78, %s81
      %p87 = scmp.eq.s32.totalorder %s21, 0
      %p88 = por %p86, %p87
      %p89 = scmp.ne.s32.totalorder %s78, %s81
      %p90 = scmp.eq.s32.totalorder %s26, 7
      %p91 = por %p89, %p90
      %p92 = scmp.ne.s32.totalorder %s81, %s82
      %p93 = scmp.eq.s32.totalorder %s26, 0
      %p94 = por %p92, %p93
      %p95 = scmp.ne.s32.totalorder %s81, %s82
      %p96 = scmp.eq.s32.totalorder %s27, 7
      %p97 = por %p95, %p96
      %p99 = scmp.ne.s32.totalorder %s82, %s98
      %p100 = scmp.eq.s32.totalorder %s27, 0
      %p101 = por %p99, %p100
      %s102 = ssub.s32 %s29, %s43
      %p103 = scmp.eq.s32.totalorder %s102, 0
      %s105 = sadd.s32 %s104, 1
      %s106 = scalar_select %p103, %s104, %s105
      %p109 = pneg %p103
      %p110 = scmp.eq.s32.totalorder %s21, 7
      %p111 = por %p109, %p110
      %p112 = scmp.ne.s32.totalorder %s104, %s107
      %p113 = scmp.eq.s32.totalorder %s21, 0
      %p114 = por %p112, %p113
      %p115 = scmp.ne.s32.totalorder %s104, %s107
      %p116 = scmp.eq.s32.totalorder %s26, 7
      %p117 = por %p115, %p116
      %p118 = scmp.ne.s32.totalorder %s107, %s108
      %p119 = scmp.eq.s32.totalorder %s26, 0
      %p120 = por %p118, %p119
      %p121 = scmp.ne.s32.totalorder %s107, %s108
      %p122 = scmp.eq.s32.totalorder %s27, 7
      %p123 = por %p121, %p122
      %p125 = scmp.ne.s32.totalorder %s108, %s124
      %p126 = scmp.eq.s32.totalorder %s27, 0
      %p127 = por %p125, %p126
      %s129 = sadd.s32 %s128, 1
      %p132 = scmp.eq.s32.totalorder %s21, 7
      %p133 = scmp.ne.s32.totalorder %s128, %s130
      %p134 = scmp.eq.s32.totalorder %s21, 0
      %p135 = por %p133, %p134
      %p136 = scmp.ne.s32.totalorder %s128, %s130
      %p137 = scmp.eq.s32.totalorder %s26, 7
      %p138 = por %p136, %p137
      %p139 = scmp.ne.s32.totalorder %s130, %s131
      %p140 = scmp.eq.s32.totalorder %s26, 0
      %p141 = por %p139, %p140
      %p142 = scmp.ne.s32.totalorder %s130, %s131
      %p143 = scmp.eq.s32.totalorder %s27, 7
      %p144 = por %p142, %p143
      %p146 = scmp.ne.s32.totalorder %s131, %s145
      %p147 = scmp.eq.s32.totalorder %s27, 0
      %p148 = por %p146, %p147
      %s150 = sadd.s32 %s149, 1
      %p153 = scmp.eq.s32.totalorder %s21, 7
      %p154 = scmp.ne.s32.totalorder %s149, %s151
      %p155 = scmp.eq.s32.totalorder %s21, 0
      %p156 = por %p154, %p155
      %p157 = scmp.ne.s32.totalorder %s149, %s151
      %p158 = scmp.eq.s32.totalorder %s26, 7
      %p159 = por %p157, %p158
      %p160 = scmp.ne.s32.totalorder %s151, %s152
      %p161 = scmp.eq.s32.totalorder %s26, 0
      %p162 = por %p160, %p161
      %p163 = scmp.ne.s32.totalorder %s151, %s152
      %p164 = scmp.eq.s32.totalorder %s27, 7
      %p165 = por %p163, %p164
      %p167 = scmp.ne.s32.totalorder %s152, %s166
      %p168 = scmp.eq.s32.totalorder %s27, 0
      %p169 = por %p167, %p168
      %s170 = ssub.s32 %s29, %s43
      %p171 = scmp.eq.s32.totalorder %s170, 0
      %s173 = sadd.s32 %s172, 1
      %s174 = scalar_select %p171, %s172, %s173
      %p177 = pneg %p171
      %p178 = scmp.eq.s32.totalorder %s21, 7
      %p179 = por %p177, %p178
      %p180 = scmp.ne.s32.totalorder %s172, %s175
      %p181 = scmp.eq.s32.totalorder %s21, 0
      %p182 = por %p180, %p181
      %p183 = scmp.ne.s32.totalorder %s172, %s175
      %p184 = scmp.eq.s32.totalorder %s26, 7
      %p185 = por %p183, %p184
      %p186 = scmp.ne.s32.totalorder %s175, %s176
      %p187 = scmp.eq.s32.totalorder %s26, 0
      %p188 = por %p186, %p187
      %p189 = scmp.ne.s32.totalorder %s175, %s176
      %p190 = scmp.eq.s32.totalorder %s27, 7
      %p191 = por %p189, %p190
      %p193 = scmp.ne.s32.totalorder %s176, %s192
      %p194 = scmp.eq.s32.totalorder %s27, 0
      %p195 = por %p193, %p194
      %p196 = scmp.le.s32.totalorder 1, %s21
      %p197 = scmp.lt.s32.totalorder %s21, 9
      %p198 = pnand %p196, %p197
      %p199 = pneg %p198
      // Predicated region
      $region9: #{tpu_custom_call.1} parent=5 // pred_check
        _
      $region10: #{tpu_custom_call.1} parent=5 // pred_check_branch
        %201 = sbr.rel (%p198) target = $region12
      $region11: #{tpu_custom_call.1} parent=5 // pred_region
        %s202 = ssub.s32 %s21, 1
        // Predicated region
        $region13: #{tpu_custom_call.1} parent=11 // pred_check
          %p203 = pneg %p141
        $region14: #{tpu_custom_call.1} parent=11 // pred_check_branch
          %205 = sbr.rel (%p203) target = $region16
        $region15: #{tpu_custom_call.1} parent=11 // pred_region
          %207 = vsyncadd [#allocation12], 0
          %s208 = sshll.u32 %s3, 4
          %s209 = int_to_ptr.hbm [resolvable:$true] %s208
          %s210 = sshll.u32 [#allocation11], 4
          %s211 = int_to_ptr.vmem [resolvable:$true] %s210
          %216 = dma.hbm_to_vmem [thread:$0]  %s209, 2048, %s211, [#allocation12], 128, 128, 8
        $region16: #{tpu_custom_call.1} parent=11 // pred_fallthru
          _
        // Predicated region
        $region17: #{tpu_custom_call.1} parent=11 // pred_check
          %p217 = pneg %p162
        $region18: #{tpu_custom_call.1} parent=11 // pred_check_branch
          %219 = sbr.rel (%p217) target = $region20
        $region19: #{tpu_custom_call.1} parent=11 // pred_region
          _
        $region20: #{tpu_custom_call.1} parent=11 // pred_fallthru
          _
      $region12: #{tpu_custom_call.1} parent=5 // pred_fallthru
        _
      %p220 = scmp.lt.s32.totalorder %s21, 8
      // Predicated region
      $region21: #{tpu_custom_call.1} parent=5 // pred_check
        %p221 = pneg %p220
      $region22: #{tpu_custom_call.1} parent=5 // pred_check_branch
        %223 = sbr.rel (%p221) target = $region24
      $region23: #{tpu_custom_call.1} parent=5 // pred_region
        // Predicated region
        $region25: #{tpu_custom_call.1} parent=23 // pred_check
          %p224 = pneg %p62
        $region26: #{tpu_custom_call.1} parent=23 // pred_check_branch
          %226 = sbr.rel (%p224) target = $region28
        $region27: #{tpu_custom_call.1} parent=23 // pred_region
          %s227 = sand.u32 %s52, 1
          %s228 = scalar_lea.sflag [#allocation6], %s227
          %s229 = sand.u32 %s52, 1
          %s230 = smul.addr %s229, 64
          %s231 = scalar_lea.vmem [#allocation5], %s230
          %s232 = smul.u32 16, %s29
          %234 = vsyncadd %s228, 0
          %s235 = smul.addr %s232, 2
          %s236 = sadd.s32 %s30, %s235
          %s237 = smul.addr %s236, 4
          %s238 = scalar_lea.hbm %s0, %s237
          %s239 = sshll.u32 %s238, 4
          %s240 = int_to_ptr.hbm [resolvable:$true] %s239
          %s241 = sshll.u32 %s231, 4
          %s242 = int_to_ptr.vmem [resolvable:$true] %s241
          %247 = dma.hbm_to_vmem [thread:$0]  %s240, 1024, %s242, %s228, 128, 64, 4
        $region28: #{tpu_custom_call.1} parent=23 // pred_fallthru
          _
        // Predicated region
        $region29: #{tpu_custom_call.1} parent=23 // pred_check
          %p248 = pneg %p88
        $region30: #{tpu_custom_call.1} parent=23 // pred_check_branch
          %250 = sbr.rel (%p248) target = $region32
        $region31: #{tpu_custom_call.1} parent=23 // pred_region
          %s251 = sand.u32 %s21, 1
          %s252 = scalar_lea.sflag [#allocation9], %s251
          %s253 = sand.u32 %s78, 1
          %s254 = smul.addr %s253, 64
          %s255 = scalar_lea.vmem [#allocation8], %s254
          %s256 = smul.u32 16, %s30
          %258 = vsyncadd %s252, 0
          %s259 = smul.addr %s256, 4
          %s260 = scalar_lea.hbm %s1, %s259
          %s261 = sshll.u32 %s260, 4
          %s262 = int_to_ptr.hbm [resolvable:$true] %s261
          %s263 = sshll.u32 %s255, 4
          %s264 = int_to_ptr.vmem [resolvable:$true] %s263
          %269 = dma.hbm_to_vmem [thread:$0]  %s262, 1024, %s264, %s252, 64, 64, 4
        $region32: #{tpu_custom_call.1} parent=23 // pred_fallthru
          _
        // Predicated region
        $region33: #{tpu_custom_call.1} parent=23 // pred_check
          %p270 = pneg %p114
        $region34: #{tpu_custom_call.1} parent=23 // pred_check_branch
          %272 = sbr.rel (%p270) target = $region36
        $region35: #{tpu_custom_call.1} parent=23 // pred_region
          %s273 = sand.u32 %s21, 1
          %s274 = scalar_lea.sflag [#allocation9], %s273
          %s275 = sand.u32 %s104, 1
          %s276 = smul.addr %s275, 128
          %s277 = scalar_lea.vmem [#allocation10], %s276
          %s278 = smul.u32 16, %s29
          %280 = vsyncadd %s274, 0
          %s281 = smul.addr %s278, 8
          %s282 = scalar_lea.hbm %s2, %s281
          %s283 = sshll.u32 %s282, 4
          %s284 = int_to_ptr.hbm [resolvable:$true] %s283
          %s285 = sshll.u32 %s277, 4
          %s286 = int_to_ptr.vmem [resolvable:$true] %s285
          %291 = dma.hbm_to_vmem [thread:$0]  %s284, 2048, %s286, %s274, 128, 128, 8
        $region36: #{tpu_custom_call.1} parent=23 // pred_fallthru
          _
      $region24: #{tpu_custom_call.1} parent=5 // pred_fallthru
        _
      %p292 = scmp.le.s32.totalorder 1, %s21
      %p293 = scmp.lt.s32.totalorder %s21, 9
      %p294 = pnand %p292, %p293
      %p295 = pneg %p294
      // Predicated region
      $region37: #{tpu_custom_call.1} parent=5 // pred_check
        _
      $region38: #{tpu_custom_call.1} parent=5 // pred_check_branch
        %297 = sbr.rel (%p294) target = $region40
      $region39: #{tpu_custom_call.1} parent=5 // pred_region
        %s298 = ssub.s32 %s21, 1
        %s299 = sand.u32 %s55, 1
        %s300 = scalar_lea.sflag [#allocation6], %s299
        %s301 = sand.u32 %s55, 1
        %s302 = smul.addr %s301, 64
        %s303 = scalar_lea.vmem [#allocation5], %s302
        // Predicated region
        $region41: #{tpu_custom_call.1} parent=39 // pred_check
          %p304 = pneg %p68
        $region42: #{tpu_custom_call.1} parent=39 // pred_check_branch
          %306 = sbr.rel (%p304) target = $region44
        $region43: #{tpu_custom_call.1} parent=39 // pred_region
          %308 = dma.done %s300, 1024
        $region44: #{tpu_custom_call.1} parent=39 // pred_fallthru
          _
        %s309 = sand.u32 %s26, 1
        %s310 = scalar_lea.sflag [#allocation9], %s309
        %s311 = sand.u32 %s81, 1
        %s312 = smul.addr %s311, 64
        %s313 = scalar_lea.vmem [#allocation8], %s312
        // Predicated region
        $region45: #{tpu_custom_call.1} parent=39 // pred_check
          %p314 = pneg %p94
        $region46: #{tpu_custom_call.1} parent=39 // pred_check_branch
          %316 = sbr.rel (%p314) target = $region48
        $region47: #{tpu_custom_call.1} parent=39 // pred_region
          %318 = dma.done %s310, 1024
        $region48: #{tpu_custom_call.1} parent=39 // pred_fallthru
          _
        %s319 = sand.u32 %s26, 1
        %s320 = scalar_lea.sflag [#allocation9], %s319
        %s321 = sand.u32 %s107, 1
        %s322 = smul.addr %s321, 128
        %s323 = scalar_lea.vmem [#allocation10], %s322
        // Predicated region
        $region49: #{tpu_custom_call.1} parent=39 // pred_check
          %p324 = pneg %p120
        $region50: #{tpu_custom_call.1} parent=39 // pred_check_branch
          %326 = sbr.rel (%p324) target = $region52
        $region51: #{tpu_custom_call.1} parent=39 // pred_region
          %328 = dma.done %s320, 2048
        $region52: #{tpu_custom_call.1} parent=39 // pred_fallthru
          _
        // Predicated region
        $region53: #{tpu_custom_call.1} parent=39 // pred_check
          %p329 = pneg %p141
        $region54: #{tpu_custom_call.1} parent=39 // pred_check_branch
          %331 = sbr.rel (%p329) target = $region56
        $region55: #{tpu_custom_call.1} parent=39 // pred_region
          %333 = dma.done [#allocation12], 2048
        $region56: #{tpu_custom_call.1} parent=39 // pred_fallthru
          _
        %s334 = sand.u32 %s55, 1
        %s335 = scalar_lea.sflag [#allocation6], %s334
        %s336 = sand.u32 %s55, 1
        %s337 = smul.addr %s336, 64
        %s338 = scalar_lea.vmem [#allocation5], %s337
        %p339 = pneg %p68
        %p340 = pneg %p65
        %s341 = sand.u32 %s26, 1
        %s342 = scalar_lea.sflag [#allocation9], %s341
        %s343 = sand.u32 %s81, 1
        %s344 = smul.addr %s343, 64
        %s345 = scalar_lea.vmem [#allocation8], %s344
        %p346 = pneg %p94
        %p347 = pneg %p91
        %s348 = sand.u32 %s26, 1
        %s349 = scalar_lea.sflag [#allocation9], %s348
        %s350 = sand.u32 %s107, 1
        %s351 = smul.addr %s350, 128
        %s352 = scalar_lea.vmem [#allocation10], %s351
        %p353 = pneg %p120
        %p354 = pneg %p117
        %p355 = pneg %p141
        %p356 = pneg %p138
        %p357 = pneg %p162
        %p358 = pneg %p159
        %p359 = pneg %p188
        %p360 = pneg %p185
        %s361 = sand.u32 %s175, 1
        %s362 = scalar_lea.sflag [#allocation7], %s361
        %s363 = sand.u32 %s175, 1
        %s364 = smul.addr %s363, 128
        %s365 = scalar_lea.vmem [#allocation13], %s364
        %s366 = smul.u32 16, %s32
        %s367 = smul.u32 16, %s33
        %s368 = smul.u32 16, %s32
        %s369 = smul.u32 16, %s32
        %s370 = sadd.s32 %s31, 1
        %p371 = scmp.lt.s32.totalorder %s370, 0
        %s372 = ssub.s32 0, %s370
        %s373 = scalar_select %p371, %s372, %s370
        %s374 = sand.u32 %s373, 1
        %s375 = ssub.s32 0, %s374
        %s376 = scalar_select %p371, %s375, %s374
        %p377 = scmp.ne.s32.totalorder %s376, 0
        %p378 = scmp.lt.s32.totalorder %s376, 0
        %p379 = pnand %p378, %p377
        %p380 = pneg %p379
        %s381 = sadd.s32 %s376, 2
        %s382 = scalar_select %p380, %s381, %s376
        %s383 = smul.u32 %s382, 256
        %p384 = scmp.lt.s32.totalorder %s31, 0
        %s385 = ssub.s32 0, %s31
        %s386 = scalar_select %p384, %s385, %s31
        %s387 = sand.u32 %s386, 1
        %s388 = ssub.s32 0, %s387
        %s389 = scalar_select %p384, %s388, %s387
        %p390 = scmp.ne.s32.totalorder %s389, 0
        %p391 = scmp.lt.s32.totalorder %s389, 0
        %p392 = pnand %p391, %p390
        %p393 = pneg %p392
        %s394 = sadd.s32 %s389, 2
        %s395 = scalar_select %p393, %s394, %s389
        %s396 = smul.u32 %s395, 256
        %p397 = scmp.eq.s32.totalorder %s31, 0
        %p398 = scmp.eq.s32.totalorder %s32, 0
        %p399 = pnand %p397, %p398
        %p400 = pneg %p399
        // Predicated region
        $region57: #{tpu_custom_call.1} parent=39 // pred_check
          _
        $region58: #{tpu_custom_call.1} parent=39 // pred_check_branch
          %402 = sbr.rel (%p399) target = $region60
        $region59: #{tpu_custom_call.1} parent=39 // pred_region
          %v403 = vld [vmem:[%s313] sm:$0xf]
          %v404 = vld [vmem:[%s313 + $0x4] sm:$0xf]
          %v405 = vld [vmem:[%s313 + $0x8] sm:$0xf]
          %v406 = vld [vmem:[%s313 + $0xc] sm:$0xf]
          %v407 = vld [vmem:[%s313 + $0x10] sm:$0xf]
          %v408 = vld [vmem:[%s313 + $0x14] sm:$0xf]
          %v409 = vld [vmem:[%s313 + $0x18] sm:$0xf]
          %v410 = vld [vmem:[%s313 + $0x1c] sm:$0xf]
          %v411 = vld [vmem:[%s313 + $0x20] sm:$0xf]
          %v412 = vld [vmem:[%s313 + $0x24] sm:$0xf]
          %v413 = vld [vmem:[%s313 + $0x28] sm:$0xf]
          %v414 = vld [vmem:[%s313 + $0x2c] sm:$0xf]
          %v415 = vld [vmem:[%s313 + $0x30] sm:$0xf]
          %v416 = vld [vmem:[%s313 + $0x34] sm:$0xf]
          %v417 = vld [vmem:[%s313 + $0x38] sm:$0xf]
          %v418 = vld [vmem:[%s313 + $0x3c] sm:$0xf]
          %s419 = smul.u32 %s33, 128
          %s420 = sadd.s32 %s419, 256
          %s421 = sshra.s32 %s420, 3
          %s422 = sand.u32 %s420, 7
          %s423 = smul.addr %s421, 4
          %s424 = scalar_lea.vmem [#allocation2], %s423
          %425 = vst [vmem:[%s424] sm:$0xf] %v403
          %426 = vst [vmem:[%s424 + $0x4] sm:$0xf] %v404
          %427 = vst [vmem:[%s424 + $0x8] sm:$0xf] %v405
          %428 = vst [vmem:[%s424 + $0xc] sm:$0xf] %v406
          %429 = vst [vmem:[%s424 + $0x10] sm:$0xf] %v407
          %430 = vst [vmem:[%s424 + $0x14] sm:$0xf] %v408
          %431 = vst [vmem:[%s424 + $0x18] sm:$0xf] %v409
          %432 = vst [vmem:[%s424 + $0x1c] sm:$0xf] %v410
          %433 = vst [vmem:[%s424 + $0x20] sm:$0xf] %v411
          %434 = vst [vmem:[%s424 + $0x24] sm:$0xf] %v412
          %435 = vst [vmem:[%s424 + $0x28] sm:$0xf] %v413
          %436 = vst [vmem:[%s424 + $0x2c] sm:$0xf] %v414
          %437 = vst [vmem:[%s424 + $0x30] sm:$0xf] %v415
          %438 = vst [vmem:[%s424 + $0x34] sm:$0xf] %v416
          %439 = vst [vmem:[%s424 + $0x38] sm:$0xf] %v417
          %440 = vst [vmem:[%s424 + $0x3c] sm:$0xf] %v418
        $region60: #{tpu_custom_call.1} parent=39 // pred_fallthru
          _
        %s441 = smul.u32 %s32, 128
        %p442 = scmp.eq.s32.totalorder %s33, 0
        %p443 = pnand %p397, %p442
        %p444 = pneg %p443
        // Predicated region
        $region61: #{tpu_custom_call.1} parent=39 // pred_check
          _
        $region62: #{tpu_custom_call.1} parent=39 // pred_check_branch
          %446 = sbr.rel (%p443) target = $region64
        $region63: #{tpu_custom_call.1} parent=39 // pred_region
          %v447 = vld [vmem:[%s323] sm:$0xff]
          %v448 = vld [vmem:[%s323 + $0x8] sm:$0xff]
          %v449 = vld [vmem:[%s323 + $0x10] sm:$0xff]
          %v450 = vld [vmem:[%s323 + $0x18] sm:$0xff]
          %v451 = vld [vmem:[%s323 + $0x20] sm:$0xff]
          %v452 = vld [vmem:[%s323 + $0x28] sm:$0xff]
          %v453 = vld [vmem:[%s323 + $0x30] sm:$0xff]
          %v454 = vld [vmem:[%s323 + $0x38] sm:$0xff]
          %v455 = vld [vmem:[%s323 + $0x40] sm:$0xff]
          %v456 = vld [vmem:[%s323 + $0x48] sm:$0xff]
          %v457 = vld [vmem:[%s323 + $0x50] sm:$0xff]
          %v458 = vld [vmem:[%s323 + $0x58] sm:$0xff]
          %v459 = vld [vmem:[%s323 + $0x60] sm:$0xff]
          %v460 = vld [vmem:[%s323 + $0x68] sm:$0xff]
          %v461 = vld [vmem:[%s323 + $0x70] sm:$0xff]
          %v462 = vld [vmem:[%s323 + $0x78] sm:$0xff]
          %v463 = vmul.f32 %v447, 0.05
          %v464 = vmul.f32 %v448, 0.05
          %v465 = vmul.f32 %v449, 0.05
          %v466 = vmul.f32 %v450, 0.05
          %v467 = vmul.f32 %v451, 0.05
          %v468 = vmul.f32 %v452, 0.05
          %v469 = vmul.f32 %v453, 0.05
          %v470 = vmul.f32 %v454, 0.05
          %v471 = vmul.f32 %v455, 0.05
          %v472 = vmul.f32 %v456, 0.05
          %v473 = vmul.f32 %v457, 0.05
          %v474 = vmul.f32 %v458, 0.05
          %v475 = vmul.f32 %v459, 0.05
          %v476 = vmul.f32 %v460, 0.05
          %v477 = vmul.f32 %v461, 0.05
          %v478 = vmul.f32 %v462, 0.05
          %s479 = scalar_lea.vmem [#allocation3], %s441
          %480 = vst [vmem:[%s479] sm:$0xff] %v463
          %481 = vst [vmem:[%s479 + $0x8] sm:$0xff] %v464
          %482 = vst [vmem:[%s479 + $0x10] sm:$0xff] %v465
          %483 = vst [vmem:[%s479 + $0x18] sm:$0xff] %v466
          %484 = vst [vmem:[%s479 + $0x20] sm:$0xff] %v467
          %485 = vst [vmem:[%s479 + $0x28] sm:$0xff] %v468
          %486 = vst [vmem:[%s479 + $0x30] sm:$0xff] %v469
          %487 = vst [vmem:[%s479 + $0x38] sm:$0xff] %v470
          %488 = vst [vmem:[%s479 + $0x40] sm:$0xff] %v471
          %489 = vst [vmem:[%s479 + $0x48] sm:$0xff] %v472
          %490 = vst [vmem:[%s479 + $0x50] sm:$0xff] %v473
          %491 = vst [vmem:[%s479 + $0x58] sm:$0xff] %v474
          %492 = vst [vmem:[%s479 + $0x60] sm:$0xff] %v475
          %493 = vst [vmem:[%s479 + $0x68] sm:$0xff] %v476
          %494 = vst [vmem:[%s479 + $0x70] sm:$0xff] %v477
          %495 = vst [vmem:[%s479 + $0x78] sm:$0xff] %v478
        $region64: #{tpu_custom_call.1} parent=39 // pred_fallthru
          _
        // Predicated region
        $region65: #{tpu_custom_call.1} parent=39 // pred_check
          %p496 = pneg %p442
        $region66: #{tpu_custom_call.1} parent=39 // pred_check_branch
          %498 = sbr.rel (%p496) target = $region68
        $region67: #{tpu_custom_call.1} parent=39 // pred_region
          %499 = vst [vmem:[#allocation4] sm:$0xff] 0.0
          %500 = vst [vmem:[#allocation4 + $0x8] sm:$0xff] 0.0
          %501 = vst [vmem:[#allocation4 + $0x10] sm:$0xff] 0.0
          %502 = vst [vmem:[#allocation4 + $0x18] sm:$0xff] 0.0
          %503 = vst [vmem:[#allocation4 + $0x20] sm:$0xff] 0.0
          %504 = vst [vmem:[#allocation4 + $0x28] sm:$0xff] 0.0
          %505 = vst [vmem:[#allocation4 + $0x30] sm:$0xff] 0.0
          %506 = vst [vmem:[#allocation4 + $0x38] sm:$0xff] 0.0
          %507 = vst [vmem:[#allocation4 + $0x40] sm:$0xff] 0.0
          %508 = vst [vmem:[#allocation4 + $0x48] sm:$0xff] 0.0
          %509 = vst [vmem:[#allocation4 + $0x50] sm:$0xff] 0.0
          %510 = vst [vmem:[#allocation4 + $0x58] sm:$0xff] 0.0
          %511 = vst [vmem:[#allocation4 + $0x60] sm:$0xff] 0.0
          %512 = vst [vmem:[#allocation4 + $0x68] sm:$0xff] 0.0
          %513 = vst [vmem:[#allocation4 + $0x70] sm:$0xff] 0.0
          %514 = vst [vmem:[#allocation4 + $0x78] sm:$0xff] 0.0
        $region68: #{tpu_custom_call.1} parent=39 // pred_fallthru
          _
        %s515 = smul.u32 %s33, 128
        %s516 = sadd.s32 %s383, %s515
        %s517 = sshra.s32 %s516, 3
        %s518 = sand.u32 %s516, 7
        %s519 = smul.addr %s517, 4
        %s520 = scalar_lea.vmem [#allocation2], %s519
        %v521 = vld [vmem:[%s520] sm:$0xf]
        %v522 = vld [vmem:[%s520 + $0x4] sm:$0xf]
        %v523 = vld [vmem:[%s520 + $0x8] sm:$0xf]
        %v524 = vld [vmem:[%s520 + $0xc] sm:$0xf]
        %v525 = vld [vmem:[%s520 + $0x10] sm:$0xf]
        %v526 = vld [vmem:[%s520 + $0x14] sm:$0xf]
        %v527 = vld [vmem:[%s520 + $0x18] sm:$0xf]
        %v528 = vld [vmem:[%s520 + $0x1c] sm:$0xf]
        %v529 = vld [vmem:[%s520 + $0x20] sm:$0xf]
        %v530 = vld [vmem:[%s520 + $0x24] sm:$0xf]
        %v531 = vld [vmem:[%s520 + $0x28] sm:$0xf]
        %v532 = vld [vmem:[%s520 + $0x2c] sm:$0xf]
        %v533 = vld [vmem:[%s520 + $0x30] sm:$0xf]
        %v534 = vld [vmem:[%s520 + $0x34] sm:$0xf]
        %v535 = vld [vmem:[%s520 + $0x38] sm:$0xf]
        %v536 = vld [vmem:[%s520 + $0x3c] sm:$0xf]
        %v537 = vld [vmem:[#allocation4] sm:$0xff]
        %v538 = vld [vmem:[#allocation4 + $0x8] sm:$0xff]
        %v539 = vld [vmem:[#allocation4 + $0x10] sm:$0xff]
        %v540 = vld [vmem:[#allocation4 + $0x18] sm:$0xff]
        %v541 = vld [vmem:[#allocation4 + $0x20] sm:$0xff]
        %v542 = vld [vmem:[#allocation4 + $0x28] sm:$0xff]
        %v543 = vld [vmem:[#allocation4 + $0x30] sm:$0xff]
        %v544 = vld [vmem:[#allocation4 + $0x38] sm:$0xff]
        %v545 = vld [vmem:[#allocation4 + $0x40] sm:$0xff]
        %v546 = vld [vmem:[#allocation4 + $0x48] sm:$0xff]
        %v547 = vld [vmem:[#allocation4 + $0x50] sm:$0xff]
        %v548 = vld [vmem:[#allocation4 + $0x58] sm:$0xff]
        %v549 = vld [vmem:[#allocation4 + $0x60] sm:$0xff]
        %v550 = vld [vmem:[#allocation4 + $0x68] sm:$0xff]
        %v551 = vld [vmem:[#allocation4 + $0x70] sm:$0xff]
        %v552 = vld [vmem:[#allocation4 + $0x78] sm:$0xff]
        %v553 = vld [vmem:[%s303] sm:$0xf]
        %v554 = vld [vmem:[%s303 + $0x4] sm:$0xf]
        %v555 = vld [vmem:[%s303 + $0x8] sm:$0xf]
        %v556 = vld [vmem:[%s303 + $0xc] sm:$0xf]
        %v557 = vld [vmem:[%s303 + $0x10] sm:$0xf]
        %v558 = vld [vmem:[%s303 + $0x14] sm:$0xf]
        %v559 = vld [vmem:[%s303 + $0x18] sm:$0xf]
        %v560 = vld [vmem:[%s303 + $0x1c] sm:$0xf]
        %v561 = vld [vmem:[%s303 + $0x20] sm:$0xf]
        %v562 = vld [vmem:[%s303 + $0x24] sm:$0xf]
        %v563 = vld [vmem:[%s303 + $0x28] sm:$0xf]
        %v564 = vld [vmem:[%s303 + $0x2c] sm:$0xf]
        %v565 = vld [vmem:[%s303 + $0x30] sm:$0xf]
        %v566 = vld [vmem:[%s303 + $0x34] sm:$0xf]
        %v567 = vld [vmem:[%s303 + $0x38] sm:$0xf]
        %v568 = vld [vmem:[%s303 + $0x3c] sm:$0xf]
        %v585 = vunpack.c.l.b16 %v553
        %v586 = vunpack.c.l.b16 %v554
        %v587 = vunpack.c.l.b16 %v555
        %v588 = vunpack.c.l.b16 %v556
        %v589 = vunpack.c.l.b16 %v557
        %v590 = vunpack.c.l.b16 %v558
        %v591 = vunpack.c.l.b16 %v559
        %v592 = vunpack.c.l.b16 %v560
        %v593 = vunpack.c.l.b16 %v561
        %v594 = vunpack.c.l.b16 %v562
        %v595 = vunpack.c.l.b16 %v563
        %v596 = vunpack.c.l.b16 %v564
        %v597 = vunpack.c.l.b16 %v565
        %v598 = vunpack.c.l.b16 %v566
        %v599 = vunpack.c.l.b16 %v567
        %v600 = vunpack.c.l.b16 %v568
        %v601 = vpack.c.b16 %v586, %v585
        %v602 = vpack.c.b16 %v588, %v587
        %v603 = vpack.c.b16 %v590, %v589
        %v604 = vpack.c.b16 %v592, %v591
        %v605 = vpack.c.b16 %v594, %v593
        %v606 = vpack.c.b16 %v596, %v595
        %v607 = vpack.c.b16 %v598, %v597
        %v608 = vpack.c.b16 %v600, %v599
        %v633 = vunpack.c.l.b16 %v521
        %v634 = vunpack.c.l.b16 %v522
        %v635 = vunpack.c.l.b16 %v523
        %v636 = vunpack.c.l.b16 %v524
        %v637 = vunpack.c.l.b16 %v525
        %v638 = vunpack.c.l.b16 %v526
        %v639 = vunpack.c.l.b16 %v527
        %v640 = vunpack.c.l.b16 %v528
        %v641 = vunpack.c.l.b16 %v529
        %v642 = vunpack.c.l.b16 %v530
        %v643 = vunpack.c.l.b16 %v531
        %v644 = vunpack.c.l.b16 %v532
        %v645 = vunpack.c.l.b16 %v533
        %v646 = vunpack.c.l.b16 %v534
        %v647 = vunpack.c.l.b16 %v535
        %v648 = vunpack.c.l.b16 %v536
        %v649 = vpack.c.b16 %v634, %v633
        %v650 = vpack.c.b16 %v636, %v635
        %v651 = vpack.c.b16 %v638, %v637
        %v652 = vpack.c.b16 %v640, %v639
        %v653 = vpack.c.b16 %v642, %v641
        %v654 = vpack.c.b16 %v644, %v643
        %v655 = vpack.c.b16 %v646, %v645
        %v656 = vpack.c.b16 %v648, %v647
        %665 = vmatpush.bf16.msra.mxu0 %v656
        %666 = vmatpush.bf16.msra.mxu0 %v655
        %667 = vmatpush.bf16.msra.mxu0 %v654
        %668 = vmatpush.bf16.msra.mxu0 %v653
        %669 = vmatpush.bf16.msra.mxu0 %v652
        %670 = vmatpush.bf16.msra.mxu0 %v651
        %671 = vmatpush.bf16.msra.mxu0 %v650
        %672 = vmatpush.bf16.msra.mxu0 %v649
        %673 = vmatmul.bf16.gmra.mxu0 %v601
        %v674 = vpop.f32.mrf.mxu0
        %v675 = vadd.f32 0.0, %v674
        %v676 = vpop.f32.mrf.mxu0
        %v677 = vadd.f32 0.0, %v676
        %678 = vmatmul.bf16.gmra.mxu0 %v602
        %v679 = vpop.f32.mrf.mxu0
        %v680 = vadd.f32 0.0, %v679
        %v681 = vpop.f32.mrf.mxu0
        %v682 = vadd.f32 0.0, %v681
        %683 = vmatmul.bf16.gmra.mxu0 %v603
        %v684 = vpop.f32.mrf.mxu0
        %v685 = vadd.f32 0.0, %v684
        %v686 = vpop.f32.mrf.mxu0
        %v687 = vadd.f32 0.0, %v686
        %688 = vmatmul.bf16.gmra.mxu0 %v604
        %v689 = vpop.f32.mrf.mxu0
        %v690 = vadd.f32 0.0, %v689
        %v691 = vpop.f32.mrf.mxu0
        %v692 = vadd.f32 0.0, %v691
        %693 = vmatmul.bf16.gmra.mxu0 %v605
        %v694 = vpop.f32.mrf.mxu0
        %v695 = vadd.f32 0.0, %v694
        %v696 = vpop.f32.mrf.mxu0
        %v697 = vadd.f32 0.0, %v696
        %698 = vmatmul.bf16.gmra.mxu0 %v606
        %v699 = vpop.f32.mrf.mxu0
        %v700 = vadd.f32 0.0, %v699
        %v701 = vpop.f32.mrf.mxu0
        %v702 = vadd.f32 0.0, %v701
        %703 = vmatmul.bf16.gmra.mxu0 %v607
        %v704 = vpop.f32.mrf.mxu0
        %v705 = vadd.f32 0.0, %v704
        %v706 = vpop.f32.mrf.mxu0
        %v707 = vadd.f32 0.0, %v706
        %708 = vmatmul.bf16.gmra.mxu0 %v608
        %v709 = vpop.f32.mrf.mxu0
        %v710 = vadd.f32 0.0, %v709
        %v711 = vpop.f32.mrf.mxu0
        %v712 = vadd.f32 0.0, %v711
        %713 = vdwg.mxu0
        %v714 = vadd.f32 %v537, %v675
        %v715 = vadd.f32 %v538, %v677
        %v716 = vadd.f32 %v539, %v680
        %v717 = vadd.f32 %v540, %v682
        %v718 = vadd.f32 %v541, %v685
        %v719 = vadd.f32 %v542, %v687
        %v720 = vadd.f32 %v543, %v690
        %v721 = vadd.f32 %v544, %v692
        %v722 = vadd.f32 %v545, %v695
        %v723 = vadd.f32 %v546, %v697
        %v724 = vadd.f32 %v547, %v700
        %v725 = vadd.f32 %v548, %v702
        %v726 = vadd.f32 %v549, %v705
        %v727 = vadd.f32 %v550, %v707
        %v728 = vadd.f32 %v551, %v710
        %v729 = vadd.f32 %v552, %v712
        %730 = vst [vmem:[#allocation4] sm:$0xff] %v714
        %731 = vst [vmem:[#allocation4 + $0x8] sm:$0xff] %v715
        %732 = vst [vmem:[#allocation4 + $0x10] sm:$0xff] %v716
        %733 = vst [vmem:[#allocation4 + $0x18] sm:$0xff] %v717
        %734 = vst [vmem:[#allocation4 + $0x20] sm:$0xff] %v718
        %735 = vst [vmem:[#allocation4 + $0x28] sm:$0xff] %v719
        %736 = vst [vmem:[#allocation4 + $0x30] sm:$0xff] %v720
        %737 = vst [vmem:[#allocation4 + $0x38] sm:$0xff] %v721
        %738 = vst [vmem:[#allocation4 + $0x40] sm:$0xff] %v722
        %739 = vst [vmem:[#allocation4 + $0x48] sm:$0xff] %v723
        %740 = vst [vmem:[#allocation4 + $0x50] sm:$0xff] %v724
        %741 = vst [vmem:[#allocation4 + $0x58] sm:$0xff] %v725
        %742 = vst [vmem:[#allocation4 + $0x60] sm:$0xff] %v726
        %743 = vst [vmem:[#allocation4 + $0x68] sm:$0xff] %v727
        %744 = vst [vmem:[#allocation4 + $0x70] sm:$0xff] %v728
        %745 = vst [vmem:[#allocation4 + $0x78] sm:$0xff] %v729
        %p746 = scmp.eq.s32.totalorder %s33, 1
        // Predicated region
        $region69: #{tpu_custom_call.1} parent=39 // pred_check
          %p747 = pneg %p746
        $region70: #{tpu_custom_call.1} parent=39 // pred_check_branch
          %749 = sbr.rel (%p747) target = $region72
        $region71: #{tpu_custom_call.1} parent=39 // pred_region
          %v750 = vld [vmem:[#allocation4] sm:$0xff]
          %v751 = vld [vmem:[#allocation4 + $0x8] sm:$0xff]
          %v752 = vld [vmem:[#allocation4 + $0x10] sm:$0xff]
          %v753 = vld [vmem:[#allocation4 + $0x18] sm:$0xff]
          %v754 = vld [vmem:[#allocation4 + $0x20] sm:$0xff]
          %v755 = vld [vmem:[#allocation4 + $0x28] sm:$0xff]
          %v756 = vld [vmem:[#allocation4 + $0x30] sm:$0xff]
          %v757 = vld [vmem:[#allocation4 + $0x38] sm:$0xff]
          %v758 = vld [vmem:[#allocation4 + $0x40] sm:$0xff]
          %v759 = vld [vmem:[#allocation4 + $0x48] sm:$0xff]
          %v760 = vld [vmem:[#allocation4 + $0x50] sm:$0xff]
          %v761 = vld [vmem:[#allocation4 + $0x58] sm:$0xff]
          %v762 = vld [vmem:[#allocation4 + $0x60] sm:$0xff]
          %v763 = vld [vmem:[#allocation4 + $0x68] sm:$0xff]
          %v764 = vld [vmem:[#allocation4 + $0x70] sm:$0xff]
          %v765 = vld [vmem:[#allocation4 + $0x78] sm:$0xff]
          %v766 = vmul.f32 %v750, 0.475
          %v767 = vmul.f32 %v751, 0.475
          %v768 = vmul.f32 %v752, 0.475
          %v769 = vmul.f32 %v753, 0.475
          %v770 = vmul.f32 %v754, 0.475
          %v771 = vmul.f32 %v755, 0.475
          %v772 = vmul.f32 %v756, 0.475
          %v773 = vmul.f32 %v757, 0.475
          %v774 = vmul.f32 %v758, 0.475
          %v775 = vmul.f32 %v759, 0.475
          %v776 = vmul.f32 %v760, 0.475
          %v777 = vmul.f32 %v761, 0.475
          %v778 = vmul.f32 %v762, 0.475
          %v779 = vmul.f32 %v763, 0.475
          %v780 = vmul.f32 %v764, 0.475
          %v781 = vmul.f32 %v765, 0.475
          %s782 = scalar_lea.vmem [#allocation3], %s441
          %v783 = vld [vmem:[%s782] sm:$0xff]
          %v784 = vld [vmem:[%s782 + $0x8] sm:$0xff]
          %v785 = vld [vmem:[%s782 + $0x10] sm:$0xff]
          %v786 = vld [vmem:[%s782 + $0x18] sm:$0xff]
          %v787 = vld [vmem:[%s782 + $0x20] sm:$0xff]
          %v788 = vld [vmem:[%s782 + $0x28] sm:$0xff]
          %v789 = vld [vmem:[%s782 + $0x30] sm:$0xff]
          %v790 = vld [vmem:[%s782 + $0x38] sm:$0xff]
          %v791 = vld [vmem:[%s782 + $0x40] sm:$0xff]
          %v792 = vld [vmem:[%s782 + $0x48] sm:$0xff]
          %v793 = vld [vmem:[%s782 + $0x50] sm:$0xff]
          %v794 = vld [vmem:[%s782 + $0x58] sm:$0xff]
          %v795 = vld [vmem:[%s782 + $0x60] sm:$0xff]
          %v796 = vld [vmem:[%s782 + $0x68] sm:$0xff]
          %v797 = vld [vmem:[%s782 + $0x70] sm:$0xff]
          %v798 = vld [vmem:[%s782 + $0x78] sm:$0xff]
          %v799 = vadd.f32 %v783, %v766
          %v800 = vadd.f32 %v784, %v767
          %v801 = vadd.f32 %v785, %v768
          %v802 = vadd.f32 %v786, %v769
          %v803 = vadd.f32 %v787, %v770
          %v804 = vadd.f32 %v788, %v771
          %v805 = vadd.f32 %v789, %v772
          %v806 = vadd.f32 %v790, %v773
          %v807 = vadd.f32 %v791, %v774
          %v808 = vadd.f32 %v792, %v775
          %v809 = vadd.f32 %v793, %v776
          %v810 = vadd.f32 %v794, %v777
          %v811 = vadd.f32 %v795, %v778
          %v812 = vadd.f32 %v796, %v779
          %v813 = vadd.f32 %v797, %v780
          %v814 = vadd.f32 %v798, %v781
          %815 = vst [vmem:[%s782] sm:$0xff] %v799
          %816 = vst [vmem:[%s782 + $0x8] sm:$0xff] %v800
          %817 = vst [vmem:[%s782 + $0x10] sm:$0xff] %v801
          %818 = vst [vmem:[%s782 + $0x18] sm:$0xff] %v802
          %819 = vst [vmem:[%s782 + $0x20] sm:$0xff] %v803
          %820 = vst [vmem:[%s782 + $0x28] sm:$0xff] %v804
          %821 = vst [vmem:[%s782 + $0x30] sm:$0xff] %v805
          %822 = vst [vmem:[%s782 + $0x38] sm:$0xff] %v806
          %823 = vst [vmem:[%s782 + $0x40] sm:$0xff] %v807
          %824 = vst [vmem:[%s782 + $0x48] sm:$0xff] %v808
          %825 = vst [vmem:[%s782 + $0x50] sm:$0xff] %v809
          %826 = vst [vmem:[%s782 + $0x58] sm:$0xff] %v810
          %827 = vst [vmem:[%s782 + $0x60] sm:$0xff] %v811
          %828 = vst [vmem:[%s782 + $0x68] sm:$0xff] %v812
          %829 = vst [vmem:[%s782 + $0x70] sm:$0xff] %v813
          %830 = vst [vmem:[%s782 + $0x78] sm:$0xff] %v814
          %v831 = vpack.c.bf16 %v766, %v766
          %v832 = vpack.c.bf16 %v767, %v767
          %v833 = vpack.c.bf16 %v768, %v768
          %v834 = vpack.c.bf16 %v769, %v769
          %v835 = vpack.c.bf16 %v770, %v770
          %v836 = vpack.c.bf16 %v771, %v771
          %v837 = vpack.c.bf16 %v772, %v772
          %v838 = vpack.c.bf16 %v773, %v773
          %v839 = vpack.c.bf16 %v774, %v774
          %v840 = vpack.c.bf16 %v775, %v775
          %v841 = vpack.c.bf16 %v776, %v776
          %v842 = vpack.c.bf16 %v777, %v777
          %v843 = vpack.c.bf16 %v778, %v778
          %v844 = vpack.c.bf16 %v779, %v779
          %v845 = vpack.c.bf16 %v780, %v780
          %v846 = vpack.c.bf16 %v781, %v781
          %s847 = sadd.s32 %s396, %s441
          %s848 = sshra.s32 %s847, 3
          %s849 = sand.u32 %s847, 7
          %s850 = smul.addr %s848, 4
          %s851 = scalar_lea.vmem [#allocation2], %s850
          %852 = vst [vmem:[%s851] sm:$0xf] %v831
          %853 = vst [vmem:[%s851 + $0x4] sm:$0xf] %v832
          %854 = vst [vmem:[%s851 + $0x8] sm:$0xf] %v833
          %855 = vst [vmem:[%s851 + $0xc] sm:$0xf] %v834
          %856 = vst [vmem:[%s851 + $0x10] sm:$0xf] %v835
          %857 = vst [vmem:[%s851 + $0x14] sm:$0xf] %v836
          %858 = vst [vmem:[%s851 + $0x18] sm:$0xf] %v837
          %859 = vst [vmem:[%s851 + $0x1c] sm:$0xf] %v838
          %860 = vst [vmem:[%s851 + $0x20] sm:$0xf] %v839
          %861 = vst [vmem:[%s851 + $0x24] sm:$0xf] %v840
          %862 = vst [vmem:[%s851 + $0x28] sm:$0xf] %v841
          %863 = vst [vmem:[%s851 + $0x2c] sm:$0xf] %v842
          %864 = vst [vmem:[%s851 + $0x30] sm:$0xf] %v843
          %865 = vst [vmem:[%s851 + $0x34] sm:$0xf] %v844
          %866 = vst [vmem:[%s851 + $0x38] sm:$0xf] %v845
          %867 = vst [vmem:[%s851 + $0x3c] sm:$0xf] %v846
          %v868 = vld [vmem:[#allocation11] sm:$0xff]
          %v869 = vld [vmem:[#allocation11 + $0x8] sm:$0xff]
          %v870 = vld [vmem:[#allocation11 + $0x10] sm:$0xff]
          %v871 = vld [vmem:[#allocation11 + $0x18] sm:$0xff]
          %v872 = vld [vmem:[#allocation11 + $0x20] sm:$0xff]
          %v873 = vld [vmem:[#allocation11 + $0x28] sm:$0xff]
          %v874 = vld [vmem:[#allocation11 + $0x30] sm:$0xff]
          %v875 = vld [vmem:[#allocation11 + $0x38] sm:$0xff]
          %v876 = vld [vmem:[#allocation11 + $0x40] sm:$0xff]
          %v877 = vld [vmem:[#allocation11 + $0x48] sm:$0xff]
          %v878 = vld [vmem:[#allocation11 + $0x50] sm:$0xff]
          %v879 = vld [vmem:[#allocation11 + $0x58] sm:$0xff]
          %v880 = vld [vmem:[#allocation11 + $0x60] sm:$0xff]
          %v881 = vld [vmem:[#allocation11 + $0x68] sm:$0xff]
          %v882 = vld [vmem:[#allocation11 + $0x70] sm:$0xff]
          %v883 = vld [vmem:[#allocation11 + $0x78] sm:$0xff]
          %v884 = vld [vmem:[%s4] sm:$0x1]
          %v886 = vperm.slane %v884, 0
          %888 = vmatpush.msra.mxu0 %v883
          %889 = vmatpush.msra.mxu0 %v882
          %890 = vmatpush.msra.mxu0 %v881
          %891 = vmatpush.msra.mxu0 %v880
          %892 = vmatpush.msra.mxu0 %v879
          %893 = vmatpush.msra.mxu0 %v878
          %894 = vmatpush.msra.mxu0 %v877
          %895 = vmatpush.msra.mxu0 %v876
          %896 = vmatpush.msra.mxu0 %v875
          %897 = vmatpush.msra.mxu0 %v874
          %898 = vmatpush.msra.mxu0 %v873
          %899 = vmatpush.msra.mxu0 %v872
          %900 = vmatpush.msra.mxu0 %v871
          %901 = vmatpush.msra.mxu0 %v870
          %902 = vmatpush.msra.mxu0 %v869
          %903 = vmatpush.msra.mxu0 %v868
          %904 = vmatmul.f32.gmra.mxu0 %v799
          %v905 = vpop.f32.mrf.mxu0
          %v906 = vadd.f32 %v886, %v905
          %907 = vmatmul.f32.gmra.mxu0 %v800
          %v908 = vpop.f32.mrf.mxu0
          %v909 = vadd.f32 %v886, %v908
          %910 = vmatmul.f32.gmra.mxu0 %v801
          %v911 = vpop.f32.mrf.mxu0
          %v912 = vadd.f32 %v886, %v911
          %913 = vmatmul.f32.gmra.mxu0 %v802
          %v914 = vpop.f32.mrf.mxu0
          %v915 = vadd.f32 %v886, %v914
          %916 = vmatmul.f32.gmra.mxu0 %v803
          %v917 = vpop.f32.mrf.mxu0
          %v918 = vadd.f32 %v886, %v917
          %919 = vmatmul.f32.gmra.mxu0 %v804
          %v920 = vpop.f32.mrf.mxu0
          %v921 = vadd.f32 %v886, %v920
          %922 = vmatmul.f32.gmra.mxu0 %v805
          %v923 = vpop.f32.mrf.mxu0
          %v924 = vadd.f32 %v886, %v923
          %925 = vmatmul.f32.gmra.mxu0 %v806
          %v926 = vpop.f32.mrf.mxu0
          %v927 = vadd.f32 %v886, %v926
          %928 = vmatmul.f32.gmra.mxu0 %v807
          %v929 = vpop.f32.mrf.mxu0
          %v930 = vadd.f32 %v886, %v929
          %931 = vmatmul.f32.gmra.mxu0 %v808
          %v932 = vpop.f32.mrf.mxu0
          %v933 = vadd.f32 %v886, %v932
          %934 = vmatmul.f32.gmra.mxu0 %v809
          %v935 = vpop.f32.mrf.mxu0
          %v936 = vadd.f32 %v886, %v935
          %937 = vmatmul.f32.gmra.mxu0 %v810
          %v938 = vpop.f32.mrf.mxu0
          %v939 = vadd.f32 %v886, %v938
          %940 = vmatmul.f32.gmra.mxu0 %v811
          %v941 = vpop.f32.mrf.mxu0
          %v942 = vadd.f32 %v886, %v941
          %943 = vmatmul.f32.gmra.mxu0 %v812
          %v944 = vpop.f32.mrf.mxu0
          %v945 = vadd.f32 %v886, %v944
          %946 = vmatmul.f32.gmra.mxu0 %v813
          %v947 = vpop.f32.mrf.mxu0
          %v948 = vadd.f32 %v886, %v947
          %949 = vmatmul.f32.gmra.mxu0 %v814
          %v950 = vpop.f32.mrf.mxu0
          %v951 = vadd.f32 %v886, %v950
          %952 = vdwg.mxu0
          %953 = vmax.xlane.f32.xlu0 %v906
          %v954 = vpop.xlane.xlu0 %953
          %955 = vmax.xlane.f32.xlu0 %v909
          %v956 = vpop.xlane.xlu0 %955
          %957 = vmax.xlane.f32.xlu0 %v912
          %v958 = vpop.xlane.xlu0 %957
          %959 = vmax.xlane.f32.xlu0 %v915
          %v960 = vpop.xlane.xlu0 %959
          %961 = vmax.xlane.f32.xlu0 %v918
          %v962 = vpop.xlane.xlu0 %961
          %963 = vmax.xlane.f32.xlu0 %v921
          %v964 = vpop.xlane.xlu0 %963
          %965 = vmax.xlane.f32.xlu0 %v924
          %v966 = vpop.xlane.xlu0 %965
          %967 = vmax.xlane.f32.xlu0 %v927
          %v968 = vpop.xlane.xlu0 %967
          %969 = vmax.xlane.f32.xlu0 %v930
          %v970 = vpop.xlane.xlu0 %969
          %971 = vmax.xlane.f32.xlu0 %v933
          %v972 = vpop.xlane.xlu0 %971
          %973 = vmax.xlane.f32.xlu0 %v936
          %v974 = vpop.xlane.xlu0 %973
          %975 = vmax.xlane.f32.xlu0 %v939
          %v976 = vpop.xlane.xlu0 %975
          %977 = vmax.xlane.f32.xlu0 %v942
          %v978 = vpop.xlane.xlu0 %977
          %979 = vmax.xlane.f32.xlu0 %v945
          %v980 = vpop.xlane.xlu0 %979
          %981 = vmax.xlane.f32.xlu0 %v948
          %v982 = vpop.xlane.xlu0 %981
          %983 = vmax.xlane.f32.xlu0 %v951
          %v984 = vpop.xlane.xlu0 %983
          %v985 = vsub.f32 %v906, %v954
          %v986 = vsub.f32 %v909, %v956
          %v987 = vsub.f32 %v912, %v958
          %v988 = vsub.f32 %v915, %v960
          %v989 = vsub.f32 %v918, %v962
          %v990 = vsub.f32 %v921, %v964
          %v991 = vsub.f32 %v924, %v966
          %v992 = vsub.f32 %v927, %v968
          %v993 = vsub.f32 %v930, %v970
          %v994 = vsub.f32 %v933, %v972
          %v995 = vsub.f32 %v936, %v974
          %v996 = vsub.f32 %v939, %v976
          %v997 = vsub.f32 %v942, %v978
          %v998 = vsub.f32 %v945, %v980
          %v999 = vsub.f32 %v948, %v982
          %v1000 = vsub.f32 %v951, %v984
          %v1001 = vmul.f32 %v985, 1.442695
          %v1002 = vpow.pop %v1001
          %v1003 = vmul.f32 %v986, 1.442695
          %v1004 = vpow.pop %v1003
          %v1005 = vmul.f32 %v987, 1.442695
          %v1006 = vpow.pop %v1005
          %v1007 = vmul.f32 %v988, 1.442695
          %v1008 = vpow.pop %v1007
          %v1009 = vmul.f32 %v989, 1.442695
          %v1010 = vpow.pop %v1009
          %v1011 = vmul.f32 %v990, 1.442695
          %v1012 = vpow.pop %v1011
          %v1013 = vmul.f32 %v991, 1.442695
          %v1014 = vpow.pop %v1013
          %v1015 = vmul.f32 %v992, 1.442695
          %v1016 = vpow.pop %v1015
          %v1017 = vmul.f32 %v993, 1.442695
          %v1018 = vpow.pop %v1017
          %v1019 = vmul.f32 %v994, 1.442695
          %v1020 = vpow.pop %v1019
          %v1021 = vmul.f32 %v995, 1.442695
          %v1022 = vpow.pop %v1021
          %v1023 = vmul.f32 %v996, 1.442695
          %v1024 = vpow.pop %v1023
          %v1025 = vmul.f32 %v997, 1.442695
          %v1026 = vpow.pop %v1025
          %v1027 = vmul.f32 %v998, 1.442695
          %v1028 = vpow.pop %v1027
          %v1029 = vmul.f32 %v999, 1.442695
          %v1030 = vpow.pop %v1029
          %v1031 = vmul.f32 %v1000, 1.442695
          %v1032 = vpow.pop %v1031
          %1033 = vadd.xlane.f32.xlu0 %v1002
          %v1034 = vpop.xlane.xlu0 %1033
          %1035 = vadd.xlane.f32.xlu0 %v1004
          %v1036 = vpop.xlane.xlu0 %1035
          %1037 = vadd.xlane.f32.xlu0 %v1006
          %v1038 = vpop.xlane.xlu0 %1037
          %1039 = vadd.xlane.f32.xlu0 %v1008
          %v1040 = vpop.xlane.xlu0 %1039
          %1041 = vadd.xlane.f32.xlu0 %v1010
          %v1042 = vpop.xlane.xlu0 %1041
          %1043 = vadd.xlane.f32.xlu0 %v1012
          %v1044 = vpop.xlane.xlu0 %1043
          %1045 = vadd.xlane.f32.xlu0 %v1014
          %v1046 = vpop.xlane.xlu0 %1045
          %1047 = vadd.xlane.f32.xlu0 %v1016
          %v1048 = vpop.xlane.xlu0 %1047
          %1049 = vadd.xlane.f32.xlu0 %v1018
          %v1050 = vpop.xlane.xlu0 %1049
          %1051 = vadd.xlane.f32.xlu0 %v1020
          %v1052 = vpop.xlane.xlu0 %1051
          %1053 = vadd.xlane.f32.xlu0 %v1022
          %v1054 = vpop.xlane.xlu0 %1053
          %1055 = vadd.xlane.f32.xlu0 %v1024
          %v1056 = vpop.xlane.xlu0 %1055
          %1057 = vadd.xlane.f32.xlu0 %v1026
          %v1058 = vpop.xlane.xlu0 %1057
          %1059 = vadd.xlane.f32.xlu0 %v1028
          %v1060 = vpop.xlane.xlu0 %1059
          %1061 = vadd.xlane.f32.xlu0 %v1030
          %v1062 = vpop.xlane.xlu0 %1061
          %1063 = vadd.xlane.f32.xlu0 %v1032
          %v1064 = vpop.xlane.xlu0 %1063
          %v1065 = vlog2.pop %v1034
          %v1066 = vmul.f32 %v1065, 0.6931472
          %v1067 = vlog2.pop %v1036
          %v1068 = vmul.f32 %v1067, 0.6931472
          %v1069 = vlog2.pop %v1038
          %v1070 = vmul.f32 %v1069, 0.6931472
          %v1071 = vlog2.pop %v1040
          %v1072 = vmul.f32 %v1071, 0.6931472
          %v1073 = vlog2.pop %v1042
          %v1074 = vmul.f32 %v1073, 0.6931472
          %v1075 = vlog2.pop %v1044
          %v1076 = vmul.f32 %v1075, 0.6931472
          %v1077 = vlog2.pop %v1046
          %v1078 = vmul.f32 %v1077, 0.6931472
          %v1079 = vlog2.pop %v1048
          %v1080 = vmul.f32 %v1079, 0.6931472
          %v1081 = vlog2.pop %v1050
          %v1082 = vmul.f32 %v1081, 0.6931472
          %v1083 = vlog2.pop %v1052
          %v1084 = vmul.f32 %v1083, 0.6931472
          %v1085 = vlog2.pop %v1054
          %v1086 = vmul.f32 %v1085, 0.6931472
          %v1087 = vlog2.pop %v1056
          %v1088 = vmul.f32 %v1087, 0.6931472
          %v1089 = vlog2.pop %v1058
          %v1090 = vmul.f32 %v1089, 0.6931472
          %v1091 = vlog2.pop %v1060
          %v1092 = vmul.f32 %v1091, 0.6931472
          %v1093 = vlog2.pop %v1062
          %v1094 = vmul.f32 %v1093, 0.6931472
          %v1095 = vlog2.pop %v1064
          %v1096 = vmul.f32 %v1095, 0.6931472
          %v1097 = vsub.f32 %v985, %v1066
          %v1098 = vsub.f32 %v986, %v1068
          %v1099 = vsub.f32 %v987, %v1070
          %v1100 = vsub.f32 %v988, %v1072
          %v1101 = vsub.f32 %v989, %v1074
          %v1102 = vsub.f32 %v990, %v1076
          %v1103 = vsub.f32 %v991, %v1078
          %v1104 = vsub.f32 %v992, %v1080
          %v1105 = vsub.f32 %v993, %v1082
          %v1106 = vsub.f32 %v994, %v1084
          %v1107 = vsub.f32 %v995, %v1086
          %v1108 = vsub.f32 %v996, %v1088
          %v1109 = vsub.f32 %v997, %v1090
          %v1110 = vsub.f32 %v998, %v1092
          %v1111 = vsub.f32 %v999, %v1094
          %v1112 = vsub.f32 %v1000, %v1096
          %1113 = vst [vmem:[%s365] sm:$0xff] %v1097
          %1114 = vst [vmem:[%s365 + $0x8] sm:$0xff] %v1098
          %1115 = vst [vmem:[%s365 + $0x10] sm:$0xff] %v1099
          %1116 = vst [vmem:[%s365 + $0x18] sm:$0xff] %v1100
          %1117 = vst [vmem:[%s365 + $0x20] sm:$0xff] %v1101
          %1118 = vst [vmem:[%s365 + $0x28] sm:$0xff] %v1102
          %1119 = vst [vmem:[%s365 + $0x30] sm:$0xff] %v1103
          %1120 = vst [vmem:[%s365 + $0x38] sm:$0xff] %v1104
          %1121 = vst [vmem:[%s365 + $0x40] sm:$0xff] %v1105
          %1122 = vst [vmem:[%s365 + $0x48] sm:$0xff] %v1106
          %1123 = vst [vmem:[%s365 + $0x50] sm:$0xff] %v1107
          %1124 = vst [vmem:[%s365 + $0x58] sm:$0xff] %v1108
          %1125 = vst [vmem:[%s365 + $0x60] sm:$0xff] %v1109
          %1126 = vst [vmem:[%s365 + $0x68] sm:$0xff] %v1110
          %1127 = vst [vmem:[%s365 + $0x70] sm:$0xff] %v1111
          %1128 = vst [vmem:[%s365 + $0x78] sm:$0xff] %v1112
        $region72: #{tpu_custom_call.1} parent=39 // pred_fallthru
          _
        %s1129 = sand.u32 %s175, 1
        %s1130 = scalar_lea.sflag [#allocation7], %s1129
        %s1131 = sand.u32 %s175, 1
        %s1132 = smul.addr %s1131, 128
        %s1133 = scalar_lea.vmem [#allocation13], %s1132
        // Predicated region
        $region73: #{tpu_custom_call.1} parent=39 // pred_check
          %p1134 = pneg %p185
        $region74: #{tpu_custom_call.1} parent=39 // pred_check_branch
          %1136 = sbr.rel (%p1134) target = $region76
        $region75: #{tpu_custom_call.1} parent=39 // pred_region
          %s1137 = smul.u32 16, %s32
          %1139 = vsyncadd %s1130, 0
          %s1140 = smul.addr %s1137, 8
          %s1141 = scalar_lea.hbm %s5, %s1140
          %s1142 = sshll.u32 %s1133, 4
          %s1143 = int_to_ptr.vmem [resolvable:$true] %s1142
          %s1144 = sshll.u32 %s1141, 4
          %s1145 = int_to_ptr.hbm [resolvable:$true] %s1144
          %1150 = dma.vmem_to_hbm [thread:$0]  %s1143, 2048, %s1145, %s1130, 128, 128, 8
        $region76: #{tpu_custom_call.1} parent=39 // pred_fallthru
          _
      $region40: #{tpu_custom_call.1} parent=5 // pred_fallthru
        _
      %p1151 = scmp.le.s32.totalorder 2, %s21
      // Predicated region
      $region77: #{tpu_custom_call.1} parent=5 // pred_check
        %p1152 = pneg %p1151
      $region78: #{tpu_custom_call.1} parent=5 // pred_check_branch
        %1154 = sbr.rel (%p1152) target = $region80
      $region79: #{tpu_custom_call.1} parent=5 // pred_region
        %s1155 = ssub.s32 %s21, 2
        // Predicated region
        $region81: #{tpu_custom_call.1} parent=79 // pred_check
          %p1156 = pneg %p191
        $region82: #{tpu_custom_call.1} parent=79 // pred_check_branch
          %1158 = sbr.rel (%p1156) target = $region84
        $region83: #{tpu_custom_call.1} parent=79 // pred_region
          %s1159 = sand.u32 %s176, 1
          %s1160 = scalar_lea.sflag [#allocation7], %s1159
          %s1161 = sand.u32 %s176, 1
          %s1162 = smul.addr %s1161, 128
          %s1163 = scalar_lea.vmem [#allocation13], %s1162
          %1165 = dma.done %s1160, 2048
        $region84: #{tpu_custom_call.1} parent=79 // pred_fallthru
          _
      $region80: #{tpu_custom_call.1} parent=5 // pred_fallthru
        _
    $region6: #{tpu_custom_call.1} parent=1 // loop_footer
      %s25 = sadd.s32 1, %s21
    $region7: #{tpu_custom_call.1} parent=1 // loop_footer_branch
      %20 = sbr.rel target = $region3
    $region8: #{tpu_custom_call.1} parent=1 // loop_exit
      _
    %1166 = vsyncpa [#allocation6], 1
    %s1167 = scalar_lea.sflag [#allocation6], 1
    %1168 = vsyncpa %s1167, 1
    %1169 = vsyncpa [#allocation9], 1
    %s1170 = scalar_lea.sflag [#allocation9], 1
    %1171 = vsyncpa %s1170, 1
    %1172 = vsyncpa [#allocation12], 1
    %1173 = vsyncpa [#allocation7], 1
    %s1174 = scalar_lea.sflag [#allocation7], 1
    %1175 = vsyncpa %s1174, 1

</llo_original>
